<compile_context>
chip_gen: v7x
topology: tpu7x:2x2x1
jax: 0.10.0
libtpu: 0.0.40
codegen_flags: <defaults>
</compile_context>

<pallas_src>
import functools

import jax
import jax.numpy as jnp
from jax import lax
from jax.experimental import pallas as pl
from jax.experimental.pallas import tpu as pltpu


def _coupling_kernel(mode, num_inputs, num_hidden,
                     x_ref, w1_ref, b1_ref, w2_ref, b2_ref, w3_ref, b3_ref,
                     y_ref, logdet_ref):
    """One batch tile of the coupling layer.

    Fused parameterisation (built host-side):
      w1: (D, 2H)   = [ diag(mask) @ sw1 | diag(mask) @ tw1 ]
      w2: (2H, 2H)  = blockdiag(sw2, tw2)
      w3: (2H, 2D)  = blockdiag(sw3 * (1-mask), tw3 * (1-mask))
    Lanes [0, H) carry the scale branch (tanh), lanes [H, 2H) the translate
    branch (relu). Matmul operands are bf16, accumulate + elementwise f32.
    """
    x = x_ref[...]                                            # (TB, D) f32

    # ---- fused layer 1: (TB, D) @ (D, 2H) ----
    h = jnp.dot(x.astype(jnp.bfloat16), w1_ref[...],
                preferred_element_type=jnp.float32) + b1_ref[...]
    lane = lax.broadcasted_iota(jnp.int32, h.shape, 1)
    # tanh on the scale half, relu on the translate half (lane-local select,
    # no cross-lane shuffles).
    h = jnp.where(lane < num_hidden, jnp.tanh(h), jnp.maximum(h, 0.0))

    # ---- fused layer 2: (TB, 2H) @ (2H, 2H), block-diagonal ----
    h = jnp.dot(h.astype(jnp.bfloat16), w2_ref[...],
                preferred_element_type=jnp.float32) + b2_ref[...]
    h = jnp.where(lane < num_hidden, jnp.tanh(h), jnp.maximum(h, 0.0))

    # ---- fused layer 3: (TB, 2H) @ (2H, 2D), block-diagonal ----
    # (1 - mask) is already folded into w3/b3, so log_s and t come out
    # pre-masked.
    z = jnp.dot(h.astype(jnp.bfloat16), w3_ref[...],
                preferred_element_type=jnp.float32) + b3_ref[...]
    log_s = z[:, :num_inputs]                                 # (TB, D)
    t = z[:, num_inputs:]                                     # (TB, D)

    if mode == "direct":
        y_ref[...] = x * jnp.exp(log_s) + t
        logdet_ref[...] = jnp.sum(log_s, axis=-1, keepdims=True)
    else:  # "inverse"
        y_ref[...] = (x - t) * jnp.exp(-log_s)
        logdet_ref[...] = -jnp.sum(log_s, axis=-1, keepdims=True)


def _round_up(x, m):
    return (x + m - 1) // m * m


def fuse_coupling_params(params, mask):
    """Fold the 0/1 mask into the weights and fuse scale/translate nets."""
    D, H = params["sw1"].shape
    m = mask.astype(jnp.float32)
    one_m = 1.0 - m

    w1 = jnp.concatenate([m[:, None] * params["sw1"],
                          m[:, None] * params["tw1"]], axis=1)          # (D, 2H)
    b1 = jnp.concatenate([params["sb1"], params["tb1"]]).reshape(1, 2 * H)

    zhh = jnp.zeros((H, H), jnp.float32)
    w2 = jnp.block([[params["sw2"], zhh],
                    [zhh, params["tw2"]]])                              # (2H, 2H)
    b2 = jnp.concatenate([params["sb2"], params["tb2"]]).reshape(1, 2 * H)

    zhd = jnp.zeros((H, D), jnp.float32)
    w3 = jnp.block([[params["sw3"] * one_m[None, :], zhd],
                    [zhd, params["tw3"] * one_m[None, :]]])             # (2H, 2D)
    b3 = jnp.concatenate([params["sb3"] * one_m,
                          params["tb3"] * one_m]).reshape(1, 2 * D)

    # bf16 weights for the MXU fast path; biases stay f32 (added post-acc).
    return (w1.astype(jnp.bfloat16), b1.astype(jnp.float32),
            w2.astype(jnp.bfloat16), b2.astype(jnp.float32),
            w3.astype(jnp.bfloat16), b3.astype(jnp.float32))


def coupling_layer(inputs, fused_params, mode="direct", tile_batch=512):
    """Pallas CouplingLayer forward.

    inputs:        (B, D) float32
    fused_params:  output of fuse_coupling_params
    Returns (outputs (B, D), logdet (B, 1)).
    """
    B, D = inputs.shape
    w1, b1, w2, b2, w3, b3 = fused_params
    H2 = w2.shape[0]                       # 2 * num_hidden
    H = H2 // 2

    TB = min(tile_batch, _round_up(B, 8))  # batch tile (rows per grid step)
    grid = (pl.cdiv(B, TB),)

    kernel = functools.partial(_coupling_kernel, mode, D, H)
    const = lambda i: (0, 0)               # weights stay resident across steps

    out, logdet = pl.pallas_call(
        kernel,
        out_shape=(
            jax.ShapeDtypeStruct((B, D), jnp.float32),
            jax.ShapeDtypeStruct((B, 1), jnp.float32),
        ),
        grid=grid,
        in_specs=[
            pl.BlockSpec((TB, D), lambda i: (i, 0)),     # x: batch-tiled
            pl.BlockSpec((D, H2), const),                # fused layer-1 weight
            pl.BlockSpec((1, H2), const),                # fused layer-1 bias
            pl.BlockSpec((H2, H2), const),               # fused layer-2 weight
            pl.BlockSpec((1, H2), const),                # fused layer-2 bias
            pl.BlockSpec((H2, 2 * D), const),            # fused layer-3 weight
            pl.BlockSpec((1, 2 * D), const),             # fused layer-3 bias
        ],
        out_specs=(
            pl.BlockSpec((TB, D), lambda i: (i, 0)),
            pl.BlockSpec((TB, 1), lambda i: (i, 0)),
        ),
        compiler_params=pltpu.CompilerParams(
            dimension_semantics=("parallel",),           # 2nd TC on v7x
            vmem_limit_bytes=32 * 1024 * 1024,
        ),
    )(inputs, w1, b1, w2, b2, w3, b3)
    return out, logdet


def _make_params(key, num_inputs, num_hidden):
    """Deterministic parameter init (weights ~ N(0, 0.2), biases = 0),
    stored as (in, out) so the hot path is x @ W + b."""
    ks = jax.random.split(key, 6)
    scale = 0.2
    return {
        "sw1": scale * jax.random.normal(ks[0], (num_inputs, num_hidden), jnp.float32),
        "sb1": jnp.zeros((num_hidden,), jnp.float32),
        "sw2": scale * jax.random.normal(ks[1], (num_hidden, num_hidden), jnp.float32),
        "sb2": jnp.zeros((num_hidden,), jnp.float32),
        "sw3": scale * jax.random.normal(ks[2], (num_hidden, num_inputs), jnp.float32),
        "sb3": jnp.zeros((num_inputs,), jnp.float32),
        "tw1": scale * jax.random.normal(ks[3], (num_inputs, num_hidden), jnp.float32),
        "tb1": jnp.zeros((num_hidden,), jnp.float32),
        "tw2": scale * jax.random.normal(ks[4], (num_hidden, num_hidden), jnp.float32),
        "tb2": jnp.zeros((num_hidden,), jnp.float32),
        "tw3": scale * jax.random.normal(ks[5], (num_hidden, num_inputs), jnp.float32),
        "tb3": jnp.zeros((num_inputs,), jnp.float32),
    }


def _reference(inputs, mask, p, mode="direct"):
    """Pure-JAX reference following the original (unfused) module semantics,
    with the same precision policy (bf16 matmul operands, f32 accumulation)."""
    def lin(a, w, b):
        return jnp.dot(a.astype(jnp.bfloat16), w.astype(jnp.bfloat16),
                       preferred_element_type=jnp.float32) + b

    masked = inputs * mask
    h = jnp.tanh(lin(masked, p["sw1"], p["sb1"]))
    h = jnp.tanh(lin(h, p["sw2"], p["sb2"]))
    log_s = lin(h, p["sw3"], p["sb3"]) * (1.0 - mask)
    g = jax.nn.relu(lin(masked, p["tw1"], p["tb1"]))
    g = jax.nn.relu(lin(g, p["tw2"], p["tb2"]))
    t = lin(g, p["tw3"], p["tb3"]) * (1.0 - mask)
    if mode == "direct":
        return inputs * jnp.exp(log_s) + t, jnp.sum(log_s, -1, keepdims=True)
    return (inputs - t) * jnp.exp(-log_s), -jnp.sum(log_s, -1, keepdims=True)


if __name__ == "__main__":
    num_inputs = 4
    num_hidden = 32
    batch = 8

    key = jax.random.PRNGKey(0)
    k_x, k_p = jax.random.split(key)

    x = jax.random.normal(k_x, (batch, num_inputs), jnp.float32)
    # alternating binary mask, as typically used in RealNVP
    mask = (jnp.arange(num_inputs) % 2).astype(jnp.float32)
    params = _make_params(k_p, num_inputs, num_hidden)
    fused = fuse_coupling_params(params, mask)

    ok = True
    for mode in ("direct", "inverse"):
        y, logdet = coupling_layer(x, fused, mode=mode)
        jax.block_until_ready((y, logdet))
        y_ref, ld_ref = _reference(x, mask.reshape(1, -1), params, mode=mode)
        ok &= bool(jnp.allclose(y, y_ref, atol=1e-4, rtol=1e-4))
        ok &= bool(jnp.allclose(logdet, ld_ref, atol=1e-4, rtol=1e-4))

    print("KERNEL_OK" if ok else "KERNEL_MISMATCH")
</pallas_src>

<mosaic_0001>
module attributes {stable_mosaic.version = 11 : i64} {
  func.func @_coupling_kernel(%arg0: i32, %arg1: memref<8x4xf32, #tpu.memory_space<vmem>>, %arg2: memref<4x64xbf16, #tpu.memory_space<vmem>>, %arg3: memref<1x64xf32, #tpu.memory_space<vmem>>, %arg4: memref<64x64xbf16, #tpu.memory_space<vmem>>, %arg5: memref<1x64xf32, #tpu.memory_space<vmem>>, %arg6: memref<64x8xbf16, #tpu.memory_space<vmem>>, %arg7: memref<1x8xf32, #tpu.memory_space<vmem>>, %arg8: memref<8x4xf32, #tpu.memory_space<vmem>>, %arg9: memref<8x1xf32, #tpu.memory_space<vmem>>) attributes {dimension_semantics = [#tpu.dimension_semantics<parallel>], iteration_bounds = array<i64: 1>, scalar_prefetch = 0 : i64, scratch_operands = 0 : i64, tpu.core_type = #tpu.core_type<tc>, window_params = [{transform_indices = @transform_0, window_bounds = array<i64: 8, 4>}, {pipeline_mode = #tpu.pipeline_mode<synchronous>, transform_indices = @transform_1, window_bounds = array<i64: 4, 64>}, {pipeline_mode = #tpu.pipeline_mode<synchronous>, transform_indices = @transform_2, window_bounds = array<i64: 1, 64>}, {pipeline_mode = #tpu.pipeline_mode<synchronous>, transform_indices = @transform_3, window_bounds = array<i64: 64, 64>}, {pipeline_mode = #tpu.pipeline_mode<synchronous>, transform_indices = @transform_4, window_bounds = array<i64: 1, 64>}, {pipeline_mode = #tpu.pipeline_mode<synchronous>, transform_indices = @transform_5, window_bounds = array<i64: 64, 8>}, {pipeline_mode = #tpu.pipeline_mode<synchronous>, transform_indices = @transform_6, window_bounds = array<i64: 1, 8>}, {transform_indices = @transform_7, window_bounds = array<i64: 8, 4>}, {transform_indices = @transform_8, window_bounds = array<i64: 8, 1>}]} {
    %c0 = arith.constant 0 : index
    %c0_0 = arith.constant 0 : index
    %0 = vector.load %arg1[%c0, %c0_0] : memref<8x4xf32, #tpu.memory_space<vmem>>, vector<8x4xf32>
    %1 = arith.truncf %0 : vector<8x4xf32> to vector<8x4xbf16>
    %c0_1 = arith.constant 0 : index
    %c0_2 = arith.constant 0 : index
    %2 = vector.load %arg2[%c0_1, %c0_2] : memref<4x64xbf16, #tpu.memory_space<vmem>>, vector<4x64xbf16>
    %cst = arith.constant dense<0.000000e+00> : vector<8x64xf32>
    %3 = tpu.matmul %1, %2, %cst {dimension_numbers = #tpu.dot_dimension_numbers<[1], [0], [0], [1], [0, 0, 1, 1], [], []>} : vector<8x4xbf16>, vector<4x64xbf16>, vector<8x64xf32> -> vector<8x64xf32>
    %c0_3 = arith.constant 0 : index
    %c0_4 = arith.constant 0 : index
    %4 = vector.load %arg3[%c0_3, %c0_4] : memref<1x64xf32, #tpu.memory_space<vmem>>, vector<1x64xf32>
    %5 = vector.broadcast %4 : vector<1x64xf32> to vector<8x64xf32>
    %6 = arith.addf %3, %5 : vector<8x64xf32>
    %7 = tpu.iota {dimensions = array<i32: 1>} : vector<8x64xi32>
    %c32_i32 = arith.constant 32 : i32
    %8 = vector.broadcast %c32_i32 : i32 to vector<8x64xi32>
    %9 = arith.cmpi slt, %7, %8 : vector<8x64xi32>
    %10 = math.tanh %6 : vector<8x64xf32>
    %cst_5 = arith.constant 0.000000e+00 : f32
    %11 = vector.broadcast %cst_5 : f32 to vector<8x64xf32>
    %12 = arith.maximumf %6, %11 : vector<8x64xf32>
    %13 = arith.select %9, %10, %12 : vector<8x64xi1>, vector<8x64xf32>
    %14 = arith.truncf %13 : vector<8x64xf32> to vector<8x64xbf16>
    %c0_6 = arith.constant 0 : index
    %c0_7 = arith.constant 0 : index
    %15 = vector.load %arg4[%c0_6, %c0_7] : memref<64x64xbf16, #tpu.memory_space<vmem>>, vector<64x64xbf16>
    %cst_8 = arith.constant dense<0.000000e+00> : vector<8x64xf32>
    %16 = tpu.matmul %14, %15, %cst_8 {dimension_numbers = #tpu.dot_dimension_numbers<[1], [0], [0], [1], [0, 0, 1, 1], [], []>} : vector<8x64xbf16>, vector<64x64xbf16>, vector<8x64xf32> -> vector<8x64xf32>
    %c0_9 = arith.constant 0 : index
    %c0_10 = arith.constant 0 : index
    %17 = vector.load %arg5[%c0_9, %c0_10] : memref<1x64xf32, #tpu.memory_space<vmem>>, vector<1x64xf32>
    %18 = vector.broadcast %17 : vector<1x64xf32> to vector<8x64xf32>
    %19 = arith.addf %16, %18 : vector<8x64xf32>
    %c32_i32_11 = arith.constant 32 : i32
    %20 = vector.broadcast %c32_i32_11 : i32 to vector<8x64xi32>
    %21 = arith.cmpi slt, %7, %20 : vector<8x64xi32>
    %22 = math.tanh %19 : vector<8x64xf32>
    %cst_12 = arith.constant 0.000000e+00 : f32
    %23 = vector.broadcast %cst_12 : f32 to vector<8x64xf32>
    %24 = arith.maximumf %19, %23 : vector<8x64xf32>
    %25 = arith.select %21, %22, %24 : vector<8x64xi1>, vector<8x64xf32>
    %26 = arith.truncf %25 : vector<8x64xf32> to vector<8x64xbf16>
    %c0_13 = arith.constant 0 : index
    %c0_14 = arith.constant 0 : index
    %27 = vector.load %arg6[%c0_13, %c0_14] : memref<64x8xbf16, #tpu.memory_space<vmem>>, vector<64x8xbf16>
    %cst_15 = arith.constant dense<0.000000e+00> : vector<8x8xf32>
    %28 = tpu.matmul %26, %27, %cst_15 {dimension_numbers = #tpu.dot_dimension_numbers<[1], [0], [0], [1], [0, 0, 1, 1], [], []>} : vector<8x64xbf16>, vector<64x8xbf16>, vector<8x8xf32> -> vector<8x8xf32>
    %c0_16 = arith.constant 0 : index
    %c0_17 = arith.constant 0 : index
    %29 = vector.load %arg7[%c0_16, %c0_17] : memref<1x8xf32, #tpu.memory_space<vmem>>, vector<1x8xf32>
    %30 = vector.broadcast %29 : vector<1x8xf32> to vector<8x8xf32>
    %31 = arith.addf %28, %30 : vector<8x8xf32>
    %32 = vector.extract_strided_slice %31 {offsets = [0, 0], sizes = [8, 4], strides = [1, 1]} : vector<8x8xf32> to vector<8x4xf32>
    %33 = vector.extract_strided_slice %31 {offsets = [0, 4], sizes = [8, 4], strides = [1, 1]} : vector<8x8xf32> to vector<8x4xf32>
    %34 = math.exp %32 : vector<8x4xf32>
    %35 = arith.mulf %0, %34 : vector<8x4xf32>
    %36 = arith.addf %35, %33 : vector<8x4xf32>
    %c0_18 = arith.constant 0 : index
    %c0_19 = arith.constant 0 : index
    %37 = vector.load %arg8[%c0_18, %c0_19] : memref<8x4xf32, #tpu.memory_space<vmem>>, vector<8x4xf32>
    tpu.vector_store %arg8[%c0_18, %c0_19], %36 {strides = array<i32>} : memref<8x4xf32, #tpu.memory_space<vmem>>, vector<8x4xf32>,
    %cst_20 = arith.constant dense<0.000000e+00> : vector<8xf32>
    %38 = vector.multi_reduction <add>, %32, %cst_20 [1] : vector<8x4xf32> to vector<8xf32>
    %39 = vector.shape_cast %38 : vector<8xf32> to vector<8x1xf32>
    %c0_21 = arith.constant 0 : index
    %c0_22 = arith.constant 0 : index
    %40 = vector.load %arg9[%c0_21, %c0_22] : memref<8x1xf32, #tpu.memory_space<vmem>>, vector<8x1xf32>
    tpu.vector_store %arg9[%c0_21, %c0_22], %39 {strides = array<i32>} : memref<8x1xf32, #tpu.memory_space<vmem>>, vector<8x1xf32>,
    return
  }
  func.func @transform_0(%arg0: i32) -> (i32, i32) {
    %c0_i32 = arith.constant 0 : i32
    %c0_i32_0 = arith.constant 0 : i32
    return %arg0, %c0_i32 : i32, i32
  }
  func.func @transform_1(%arg0: i32) -> (i32, i32) {
    %c0_i32 = arith.constant 0 : i32
    %c0_i32_0 = arith.constant 0 : i32
    %c0_i32_1 = arith.constant 0 : i32
    return %c0_i32, %c0_i32_0 : i32, i32
  }
  func.func @transform_2(%arg0: i32) -> (i32, i32) {
    %c0_i32 = arith.constant 0 : i32
    %c0_i32_0 = arith.constant 0 : i32
    %c0_i32_1 = arith.constant 0 : i32
    return %c0_i32, %c0_i32_0 : i32, i32
  }
  func.func @transform_3(%arg0: i32) -> (i32, i32) {
    %c0_i32 = arith.constant 0 : i32
    %c0_i32_0 = arith.constant 0 : i32
    %c0_i32_1 = arith.constant 0 : i32
    return %c0_i32, %c0_i32_0 : i32, i32
  }
  func.func @transform_4(%arg0: i32) -> (i32, i32) {
    %c0_i32 = arith.constant 0 : i32
    %c0_i32_0 = arith.constant 0 : i32
    %c0_i32_1 = arith.constant 0 : i32
    return %c0_i32, %c0_i32_0 : i32, i32
  }
  func.func @transform_5(%arg0: i32) -> (i32, i32) {
    %c0_i32 = arith.constant 0 : i32
    %c0_i32_0 = arith.constant 0 : i32
    %c0_i32_1 = arith.constant 0 : i32
    return %c0_i32, %c0_i32_0 : i32, i32
  }
  func.func @transform_6(%arg0: i32) -> (i32, i32) {
    %c0_i32 = arith.constant 0 : i32
    %c0_i32_0 = arith.constant 0 : i32
    %c0_i32_1 = arith.constant 0 : i32
    return %c0_i32, %c0_i32_0 : i32, i32
  }
  func.func @transform_7(%arg0: i32) -> (i32, i32) {
    %c0_i32 = arith.constant 0 : i32
    %c0_i32_0 = arith.constant 0 : i32
    return %arg0, %c0_i32 : i32, i32
  }
  func.func @transform_8(%arg0: i32) -> (i32, i32) {
    %c0_i32 = arith.constant 0 : i32
    %c0_i32_0 = arith.constant 0 : i32
    return %arg0, %c0_i32 : i32, i32
  }
}

</mosaic_0001>

<llo_original>
// kernel: tpu_custom_call.1
$region0: #{tpu_custom_call.1}
  #allocation0 [shape = 'u32[]', space=smem, size = 0x4, offset = 0x4, fixed_abs, tag = 'smem constant byte address 0x4 - core index']
  #allocation1 [shape = 'u32[144,128]{1,0:T(1,128)}', space=vmem, size = 0x12000, scoped, tag = 'internal scratch']
  %s0 = inlined_call_operand.vmem [shape: f32[8,4], index: 0, kind: input, shape index: {}]
  %s1 = inlined_call_operand.vmem [shape: bf16[4,64], index: 1, kind: input, shape index: {}]
  %s2 = inlined_call_operand.vmem [shape: f32[1,64], index: 2, kind: input, shape index: {}]
  %s3 = inlined_call_operand.vmem [shape: bf16[64,64], index: 3, kind: input, shape index: {}]
  %s4 = inlined_call_operand.vmem [shape: f32[1,64], index: 4, kind: input, shape index: {}]
  %s5 = inlined_call_operand.vmem [shape: bf16[64,8], index: 5, kind: input, shape index: {}]
  %s6 = inlined_call_operand.vmem [shape: f32[1,8], index: 6, kind: input, shape index: {}]
  %s7 = inlined_call_operand.vmem [shape: f32[8,4], index: 7, kind: output, shape index: {0}]
  %s8 = inlined_call_operand.vmem [shape: f32[8,1], index: 8, kind: output, shape index: {1}]
  %9 = xla_tuple %s7, %s8
  %s10 = sld [smem:[#allocation0]]
  $region46: #{tpu_custom_call.1} parent=0
    _
  %s12 = ssub.s32 1, %s10
  %s13 = scalar_select 0, %s12, %s10
  // Predicated region
  $region2: #{tpu_custom_call.1} parent=0 // pred_check
    _
  $region3: #{tpu_custom_call.1} parent=0 // pred_check_branch
    %15 = sbr.rel (0) target = $region5
  $region4: #{tpu_custom_call.1} parent=0 // pred_region
    _
  $region5: #{tpu_custom_call.1} parent=0 // pred_fallthru
    _
  // Predicated region
  $region6: #{tpu_custom_call.1} parent=0 // pred_check
    _
  $region7: #{tpu_custom_call.1} parent=0 // pred_check_branch
    %17 = sbr.rel (0) target = $region9
  $region8: #{tpu_custom_call.1} parent=0 // pred_region
    _
  $region9: #{tpu_custom_call.1} parent=0 // pred_fallthru
    _
  // Predicated region
  $region10: #{tpu_custom_call.1} parent=0 // pred_check
    _
  $region11: #{tpu_custom_call.1} parent=0 // pred_check_branch
    %19 = sbr.rel (0) target = $region13
  $region12: #{tpu_custom_call.1} parent=0 // pred_region
    _
  $region13: #{tpu_custom_call.1} parent=0 // pred_fallthru
    _
  // Predicated region
  $region14: #{tpu_custom_call.1} parent=0 // pred_check
    _
  $region15: #{tpu_custom_call.1} parent=0 // pred_check_branch
    %21 = sbr.rel (0) target = $region17
  $region16: #{tpu_custom_call.1} parent=0 // pred_region
    _
  $region17: #{tpu_custom_call.1} parent=0 // pred_fallthru
    _
  // Predicated region
  $region18: #{tpu_custom_call.1} parent=0 // pred_check
    _
  $region19: #{tpu_custom_call.1} parent=0 // pred_check_branch
    %23 = sbr.rel (0) target = $region21
  $region20: #{tpu_custom_call.1} parent=0 // pred_region
    _
  $region21: #{tpu_custom_call.1} parent=0 // pred_fallthru
    _
  // Predicated region
  $region22: #{tpu_custom_call.1} parent=0 // pred_check
    _
  $region23: #{tpu_custom_call.1} parent=0 // pred_check_branch
    %25 = sbr.rel (0) target = $region25
  $region24: #{tpu_custom_call.1} parent=0 // pred_region
    _
  $region25: #{tpu_custom_call.1} parent=0 // pred_fallthru
    _
  // Predicated region
  $region26: #{tpu_custom_call.1} parent=0 // pred_check
    _
  $region27: #{tpu_custom_call.1} parent=0 // pred_check_branch
    %27 = sbr.rel (0) target = $region29
  $region28: #{tpu_custom_call.1} parent=0 // pred_region
    _
  $region29: #{tpu_custom_call.1} parent=0 // pred_fallthru
    _
  %v29 = vld [vmem:[%s0] sm:$0xff]
  %v30 = vpack.c.bf16 %v29, %v29
  %v31 = vld [vmem:[%s1] sm:$0x3]
  %v32 = vld [vmem:[%s2] sm:$0x1]
  %v34 = vlaneseq
  %v35 = vshrl.u32 %v34, 7
  %v36 = vsub.s32 0, %v35
  %v37 = vrot.slane %v32, %v36
  %vm39 = vcmask 31744
  %v41 = vsel %vm39, %v30, 0
  %vm43 = vcmask 1041408
  %v45 = vsel %vm43, %v31, 0
  %47 = vmatprep.subr.bf16.mxu0 0
  %48 = vmatpush1.bf16.msra.mxu0 %v45
  %49 = vmatprep.subr.bf16.mxu0 0
  %50 = vmatpush1.bf16.msra.mxu0 0
  %51 = vmatprep.subr.bf16.mxu0 0
  %52 = vmatpush1.bf16.msra.mxu0 0
  %53 = vmatprep.subr.bf16.mxu0 0
  %54 = vmatpush1.bf16.msra.mxu0 0
  %55 = vmatprep.subr.bf16.mxu0 0
  %56 = vmatpush1.bf16.msra.mxu0 0
  %57 = vmatprep.subr.bf16.mxu0 0
  %58 = vmatpush1.bf16.msra.mxu0 0
  %59 = vmatprep.subr.bf16.mxu0 0
  %60 = vmatpush1.bf16.msra.mxu0 0
  %61 = vmatprep.subr.bf16.mxu0 0
  %62 = vmatpush1.bf16.msra.mxu0 0
  %63 = vmatprep.subr.bf16.mxu0 0
  %64 = vmatpush1.bf16.msra.mxu0 0
  %65 = vmatprep.subr.bf16.mxu0 0
  %66 = vmatpush1.bf16.msra.mxu0 0
  %67 = vmatprep.subr.bf16.mxu0 0
  %68 = vmatpush1.bf16.msra.mxu0 0
  %69 = vmatprep.subr.bf16.mxu0 0
  %70 = vmatpush1.bf16.msra.mxu0 0
  %71 = vmatprep.subr.bf16.mxu0 0
  %72 = vmatpush1.bf16.msra.mxu0 0
  %73 = vmatprep.subr.bf16.mxu0 0
  %74 = vmatpush1.bf16.msra.mxu0 0
  %75 = vmatprep.subr.bf16.mxu0 0
  %76 = vmatpush1.bf16.msra.mxu0 0
  %77 = vmatprep.subr.bf16.mxu0 0
  %78 = vmatpush1.bf16.msra.mxu0 0
  %79 = vmatprep.mubr.bf16.mxu0 0
  %80 = vmatmul.mubr.bf16.gmra.mrb[0].mxu0 %v41
  %v81 = vpop.f32.mrb[0].mxu0
  %v82 = vadd.f32 %v37, %v81
  %v83 = vpop.f32.mrb[0].mxu0
  %v84 = vpop.f32.mrb[0].mxu0
  %v85 = vpop.f32.mrb[0].mxu0
  %86 = vdwg.mxu0
  %v87 = vlaneseq
  %v88 = vand.u32 %v87, 127
  %vm89 = vcmp.lt.s32.totalorder %v88, 32
  %v90 = vtanh.pop %v82
  %v91 = vmax.f32 %v82, 0.0
  %v92 = vsel %vm89, %v90, %v91
  %v93 = vpack.c.bf16 %v92, %v92
  %v94 = vld [vmem:[%s3] sm:$0xf]
  %v95 = vld [vmem:[%s3 + $0x4] sm:$0xf]
  %v96 = vld [vmem:[%s3 + $0x8] sm:$0xf]
  %v97 = vld [vmem:[%s3 + $0xc] sm:$0xf]
  %v98 = vld [vmem:[%s3 + $0x10] sm:$0xf]
  %v99 = vld [vmem:[%s3 + $0x14] sm:$0xf]
  %v100 = vld [vmem:[%s3 + $0x18] sm:$0xf]
  %v101 = vld [vmem:[%s3 + $0x1c] sm:$0xf]
  %v102 = vld [vmem:[%s4] sm:$0x1]
  %v104 = vlaneseq
  %v105 = vshrl.u32 %v104, 7
  %v106 = vsub.s32 0, %v105
  %v107 = vrot.slane %v102, %v106
  %v117 = vunpack.c.l.b16 %v94
  %v118 = vunpack.c.l.b16 %v95
  %v119 = vunpack.c.l.b16 %v96
  %v120 = vunpack.c.l.b16 %v97
  %v121 = vunpack.c.l.b16 %v98
  %v122 = vunpack.c.l.b16 %v99
  %v123 = vunpack.c.l.b16 %v100
  %v124 = vunpack.c.l.b16 %v101
  %v125 = vpack.c.b16 %v118, %v117
  %v126 = vpack.c.b16 %v120, %v119
  %v127 = vpack.c.b16 %v122, %v121
  %v128 = vpack.c.b16 %v124, %v123
  %vm133 = vcmask 523264
  %v135 = vsel %vm133, %v93, 0
  %137 = vmatprep.subr.bf16.mxu0 0
  %138 = vmatpush1.bf16.msra.mxu0 %v125
  %139 = vmatprep.subr.bf16.mxu0 0
  %140 = vmatpush1.bf16.msra.mxu0 %v126
  %141 = vmatprep.subr.bf16.mxu0 0
  %142 = vmatpush1.bf16.msra.mxu0 %v127
  %143 = vmatprep.subr.bf16.mxu0 0
  %144 = vmatpush1.bf16.msra.mxu0 %v128
  %145 = vmatprep.subr.bf16.mxu0 0
  %146 = vmatpush1.bf16.msra.mxu0 0
  %147 = vmatprep.subr.bf16.mxu0 0
  %148 = vmatpush1.bf16.msra.mxu0 0
  %149 = vmatprep.subr.bf16.mxu0 0
  %150 = vmatpush1.bf16.msra.mxu0 0
  %151 = vmatprep.subr.bf16.mxu0 0
  %152 = vmatpush1.bf16.msra.mxu0 0
  %153 = vmatprep.subr.bf16.mxu0 0
  %154 = vmatpush1.bf16.msra.mxu0 0
  %155 = vmatprep.subr.bf16.mxu0 0
  %156 = vmatpush1.bf16.msra.mxu0 0
  %157 = vmatprep.subr.bf16.mxu0 0
  %158 = vmatpush1.bf16.msra.mxu0 0
  %159 = vmatprep.subr.bf16.mxu0 0
  %160 = vmatpush1.bf16.msra.mxu0 0
  %161 = vmatprep.subr.bf16.mxu0 0
  %162 = vmatpush1.bf16.msra.mxu0 0
  %163 = vmatprep.subr.bf16.mxu0 0
  %164 = vmatpush1.bf16.msra.mxu0 0
  %165 = vmatprep.subr.bf16.mxu0 0
  %166 = vmatpush1.bf16.msra.mxu0 0
  %167 = vmatprep.subr.bf16.mxu0 0
  %168 = vmatpush1.bf16.msra.mxu0 0
  %169 = vmatprep.mubr.bf16.mxu0 0
  %170 = vmatmul.mubr.bf16.gmra.mrb[0].mxu0 %v135
  %v171 = vpop.f32.mrb[0].mxu0
  %v172 = vadd.f32 %v107, %v171
  %v173 = vpop.f32.mrb[0].mxu0
  %v174 = vpop.f32.mrb[0].mxu0
  %v175 = vpop.f32.mrb[0].mxu0
  %176 = vdwg.mxu0
  %v177 = vtanh.pop %v172
  %v178 = vmax.f32 %v172, 0.0
  %v179 = vsel %vm89, %v177, %v178
  %v180 = vpack.c.bf16 %v179, %v179
  %v181 = vld [vmem:[%s5] sm:$0xf]
  %v182 = vld [vmem:[%s5 + $0x4] sm:$0xf]
  %v183 = vld [vmem:[%s5 + $0x8] sm:$0xf]
  %v184 = vld [vmem:[%s5 + $0xc] sm:$0xf]
  %v185 = vld [vmem:[%s5 + $0x10] sm:$0xf]
  %v186 = vld [vmem:[%s5 + $0x14] sm:$0xf]
  %v187 = vld [vmem:[%s5 + $0x18] sm:$0xf]
  %v188 = vld [vmem:[%s5 + $0x1c] sm:$0xf]
  %v189 = vld [vmem:[%s6] sm:$0x1]
  %v191 = vlaneseq
  %v192 = vshrl.u32 %v191, 7
  %v193 = vsub.s32 0, %v192
  %v194 = vrot.slane %v189, %v193
  %v204 = vunpack.c.l.b16 %v181
  %v205 = vunpack.c.l.b16 %v182
  %v206 = vunpack.c.l.b16 %v183
  %v207 = vunpack.c.l.b16 %v184
  %v208 = vunpack.c.l.b16 %v185
  %v209 = vunpack.c.l.b16 %v186
  %v210 = vunpack.c.l.b16 %v187
  %v211 = vunpack.c.l.b16 %v188
  %v212 = vpack.c.b16 %v205, %v204
  %v213 = vpack.c.b16 %v207, %v206
  %v214 = vpack.c.b16 %v209, %v208
  %v215 = vpack.c.b16 %v211, %v210
  %v221 = vsel %vm133, %v180, 0
  %223 = vmatprep.subr.bf16.mxu0 0
  %224 = vmatpush1.bf16.msra.mxu0 %v212
  %225 = vmatprep.subr.bf16.mxu0 0
  %226 = vmatpush1.bf16.msra.mxu0 %v213
  %227 = vmatprep.subr.bf16.mxu0 0
  %228 = vmatpush1.bf16.msra.mxu0 %v214
  %229 = vmatprep.subr.bf16.mxu0 0
  %230 = vmatpush1.bf16.msra.mxu0 %v215
  %231 = vmatprep.subr.bf16.mxu0 0
  %232 = vmatpush1.bf16.msra.mxu0 0
  %233 = vmatprep.subr.bf16.mxu0 0
  %234 = vmatpush1.bf16.msra.mxu0 0
  %235 = vmatprep.subr.bf16.mxu0 0
  %236 = vmatpush1.bf16.msra.mxu0 0
  %237 = vmatprep.subr.bf16.mxu0 0
  %238 = vmatpush1.bf16.msra.mxu0 0
  %239 = vmatprep.subr.bf16.mxu0 0
  %240 = vmatpush1.bf16.msra.mxu0 0
  %241 = vmatprep.subr.bf16.mxu0 0
  %242 = vmatpush1.bf16.msra.mxu0 0
  %243 = vmatprep.subr.bf16.mxu0 0
  %244 = vmatpush1.bf16.msra.mxu0 0
  %245 = vmatprep.subr.bf16.mxu0 0
  %246 = vmatpush1.bf16.msra.mxu0 0
  %247 = vmatprep.subr.bf16.mxu0 0
  %248 = vmatpush1.bf16.msra.mxu0 0
  %249 = vmatprep.subr.bf16.mxu0 0
  %250 = vmatpush1.bf16.msra.mxu0 0
  %251 = vmatprep.subr.bf16.mxu0 0
  %252 = vmatpush1.bf16.msra.mxu0 0
  %253 = vmatprep.subr.bf16.mxu0 0
  %254 = vmatpush1.bf16.msra.mxu0 0
  %255 = vmatprep.mubr.bf16.mxu0 0
  %256 = vmatmul.mubr.bf16.gmra.mrb[0].mxu0 %v221
  %v257 = vpop.f32.mrb[0].mxu0
  %v258 = vadd.f32 %v194, %v257
  %v259 = vpop.f32.mrb[0].mxu0
  %v260 = vpop.f32.mrb[0].mxu0
  %v261 = vpop.f32.mrb[0].mxu0
  %262 = vdwg.mxu0
  %v263 = vmul.f32 %v258, 1.442695
  %v264 = vpow.pop %v263
  %v265 = vmul.f32 %v29, %v264
  %267 = vrot.lane.b32.xlu0 %v258, 124
  %v268 = vpop.permute.xlu0 %267
  %v270 = vadd.f32 %v265, %v268
  %271 = vst.msk [vmem:[%s7] sm:$0xff] %vm39, %v270
  %v272 = vsel %vm39, %v258, 0.0
  %273 = vadd.xlane.f32.xlu0 %v272
  %v274 = vpop.xlane.xlu0 %273
  %vm275 = vcmask 7168
  %276 = vst.msk [vmem:[%s8] sm:$0xff] %vm275, %v274
  // Predicated region
  $region30: #{tpu_custom_call.1} parent=0 // pred_check
    _
  $region31: #{tpu_custom_call.1} parent=0 // pred_check_branch
    %278 = sbr.rel (0) target = $region33
  $region32: #{tpu_custom_call.1} parent=0 // pred_region
    _
  $region33: #{tpu_custom_call.1} parent=0 // pred_fallthru
    _
  // Predicated region
  $region34: #{tpu_custom_call.1} parent=0 // pred_check
    _
  $region35: #{tpu_custom_call.1} parent=0 // pred_check_branch
    %280 = sbr.rel (0) target = $region37
  $region36: #{tpu_custom_call.1} parent=0 // pred_region
    _
  $region37: #{tpu_custom_call.1} parent=0 // pred_fallthru
    _
  // Predicated region
  $region38: #{tpu_custom_call.1} parent=0 // pred_check
    _
  $region39: #{tpu_custom_call.1} parent=0 // pred_check_branch
    %282 = sbr.rel (0) target = $region41
  $region40: #{tpu_custom_call.1} parent=0 // pred_region
    _
  $region41: #{tpu_custom_call.1} parent=0 // pred_fallthru
    _
  // Predicated region
  $region42: #{tpu_custom_call.1} parent=0 // pred_check
    _
  $region43: #{tpu_custom_call.1} parent=0 // pred_check_branch
    %284 = sbr.rel (0) target = $region45
  $region44: #{tpu_custom_call.1} parent=0 // pred_region
    _
  $region45: #{tpu_custom_call.1} parent=0 // pred_fallthru
    _

</llo_original>
